<compile_context>
chip_gen: v6e
topology: v6e:2x2x1
jax: 0.10.0
libtpu: 0.0.40
codegen_flags: <defaults>
</compile_context>

<pallas_src>
import math
import functools

import jax
import jax.numpy as jnp
from jax import lax
from jax.experimental import pallas as pl
from jax.experimental.pallas import tpu as pltpu  # noqa: F401  (no scratch needed in this version)


def _floordiv(x, n):
    """x // n for an int32 iota array; shift when n is a power of two."""
    if n & (n - 1) == 0:
        return x >> (n.bit_length() - 1)
    return x // n


def _mod(x, n):
    """x % n for an int32 iota array; AND when n is a power of two."""
    if n & (n - 1) == 0:
        return x & (n - 1)
    return x % n


def _memory_unit_kernel(x1_ref, x2_ref, mem_ref, wq_ref, wk_ref, wv_ref, o_ref,
                        *, B, N, H, Dh, dv, scale, inv_sqrt_dim):
    f32 = jnp.float32
    bf16 = jnp.bfloat16
    ctT = (((1,), (1,)), ((), ()))            # contract dim1 <-> dim1  (x @ W^T)
    BN = B * N

    # ---- loads + one-time bf16 casts of every MXU operand -------------------
    x1_bf = x1_ref[...].astype(bf16)          # (BN, D)
    x2_bf = x2_ref[...].astype(bf16)          # (BN, D)
    mem_bf = mem_ref[...].astype(bf16)        # (K, D), K == B
    wq_bf = wq_ref[...].astype(bf16)          # (H*Dh, D)
    wk_bf = wk_ref[...].astype(bf16)
    wv_bf = wv_ref[...].astype(bf16)

    # ---- q/k/v projections: all heads in one matmul each; scales folded ----
    q = lax.dot_general(x1_bf, wq_bf, ctT, preferred_element_type=f32) * scale
    k = lax.dot_general(x2_bf, wk_bf, ctT, preferred_element_type=f32)
    v = lax.dot_general(mem_bf, wv_bf, ctT, preferred_element_type=f32) * inv_sqrt_dim
    q_bf = q.astype(bf16)                     # (BN, H*Dh), softmax scale inside
    k_bf = k.astype(bf16)                     # (BN, H*Dh)
    v_bf = v.astype(bf16)                     # (K,  H*Dh), 1/sqrt(D) inside

    # ---- constant 0/1 selection matrices (iota-built once; shift/AND) -------
    # blk_mask[r, c] = 1 iff rows r, c belong to the same batch        (BN, BN)
    r0 = lax.broadcasted_iota(jnp.int32, (BN, BN), 0)
    c0 = lax.broadcasted_iota(jnp.int32, (BN, BN), 1)
    blk_mask = _floordiv(r0, N) == _floordiv(c0, N)
    # rep[r, b]  = 1 iff r // N == b                                   (BN, B)
    r1 = lax.broadcasted_iota(jnp.int32, (BN, B), 0)
    c1 = lax.broadcasted_iota(jnp.int32, (BN, B), 1)
    rep_bf = (_floordiv(r1, N) == c1).astype(f32).astype(bf16)
    # repT[b, r] = 1 iff r // N == b                                   (B, BN)
    r2 = lax.broadcasted_iota(jnp.int32, (B, BN), 0)
    c2 = lax.broadcasted_iota(jnp.int32, (B, BN), 1)
    repT_bf = (_floordiv(c2, N) == r2).astype(f32).astype(bf16)
    # csel[r, c] = 1 iff c // dv == r % N                              (BN, Dh)
    r3 = lax.broadcasted_iota(jnp.int32, (BN, Dh), 0)
    c3 = lax.broadcasted_iota(jnp.int32, (BN, Dh), 1)
    csel = (_floordiv(c3, dv) == _mod(r3, N)).astype(f32)
    csel_bf = csel.astype(bf16)
    # ee[c, c2]  = 1 iff c % dv == c2 % dv                             (Dh, Dh)
    r4 = lax.broadcasted_iota(jnp.int32, (Dh, Dh), 0)
    c4 = lax.broadcasted_iota(jnp.int32, (Dh, Dh), 1)
    ee_bf = (_mod(r4, dv) == _mod(c4, dv)).astype(f32).astype(bf16)

    neg_big = jnp.float32(-1e30)

    # ---- per-head: batched-over-B attention, flattened attn@v, logits ------
    # memory_bank_att is never materialized as a (K, D) array: each head's
    # (B, Dh) slab stays in vregs and x1_h @ mba_h^T is accumulated directly.
    logits = jnp.zeros((BN, B), dtype=f32)
    for h in range(H):                        # H is small; production: grid axis
        sl = slice(h * Dh, (h + 1) * Dh)
        q_h, k_h, v_h = q_bf[:, sl], k_bf[:, sl], v_bf[:, sl]

        # dots for all batches at once; cross-batch blocks masked before softmax
        dots = lax.dot_general(q_h, k_h, ctT, preferred_element_type=f32)  # (BN, BN)
        dots = jnp.where(blk_mask, dots, neg_big)
        dots = dots - jnp.max(dots, axis=-1, keepdims=True)
        p = jnp.exp(dots)
        attn = p * pl.reciprocal(jnp.sum(p, axis=-1, keepdims=True), approx=True)
        attn_bf = attn.astype(bf16)           # block-diagonal (BN, BN)

        # Flattened (attn @ v) for all batches via selection matmuls only
        # (no in-kernel reshapes/transposes):
        #   ae[b*N+n, c]  = attn[b, n, c//dv]
        #   ve[b*N+n, c]  = v_h[b, c]
        #   qm[b*N+n, c]  = sum_m attn[b, n, m] * v_h[b, m*dv + c%dv]
        #   mba_h[b, c']  = qm[b*N + c'//dv, c']   == torch's flattened mba chunk
        ae = jnp.dot(attn_bf, csel_bf, preferred_element_type=f32)          # (BN, Dh)
        ve = jnp.dot(rep_bf, v_h, preferred_element_type=f32)               # (BN, Dh)
        qm = jnp.dot((ae * ve).astype(bf16), ee_bf,
                     preferred_element_type=f32)                            # (BN, Dh)
        mba_h = jnp.dot(repT_bf, (qm * csel).astype(bf16),
                        preferred_element_type=f32)                         # (B, Dh)

        # logits contribution of this head (1/sqrt(D) already folded into v)
        logits = logits + lax.dot_general(x1_bf[:, sl], mba_h.astype(bf16),
                                          ctT, preferred_element_type=f32)  # (BN, K)

    # ---- numerically-stable sigmoid (exact reciprocal) + augment ------------
    z = jnp.exp(-jnp.abs(logits))
    inv = 1.0 / (1.0 + z)
    attention = jnp.where(logits >= 0, inv, z * inv)                         # (BN, K)
    # TODO(synk): at production D (multiple of 128) this store is already
    # lane-dense; at toy D=32 it is a (BN, 32) masked store, which is negligible.
    o_ref[...] = jnp.dot(attention.astype(bf16), mem_bf,
                         preferred_element_type=f32)                         # (BN, D)


def memory_unit_forward(x1, x2, memory_block, wq, wk, wv, *, heads, dim_head):
    B, N, D = x1.shape
    K = memory_block.shape[0]
    H, Dh = heads, dim_head
    inner = H * Dh
    assert D == inner, "final einsum 'btd,kd' requires dim == heads * dim_head"
    assert Dh % N == 0, "rearrange 'k (h n d)' requires dim_head % seq == 0"
    assert K == B, "torch broadcast in matmul(attn, v) requires nums == batch"
    dv = Dh // N

    kernel = functools.partial(
        _memory_unit_kernel,
        B=B, N=N, H=H, Dh=Dh, dv=dv,
        scale=Dh ** -0.5, inv_sqrt_dim=1.0 / math.sqrt(D))

    # Host-side glue is only cheap leading-axis reshapes (no transposes).
    outf = pl.pallas_call(
        kernel,
        out_shape=jax.ShapeDtypeStruct((B * N, D), jnp.float32),
    )(x1.reshape(B * N, D), x2.reshape(B * N, D), memory_block, wq, wk, wv)

    return outf.reshape(B, N, D)


def memory_unit_reference(x1, x2, memory_block, wq, wk, wv, *, heads, dim_head):
    # Pure-JAX f32 mirror of the torch forward (verification only).
    B, N, D = x1.shape
    K = memory_block.shape[0]
    H, Dh = heads, dim_head
    dv = Dh // N
    q = (x1 @ wq.T).reshape(B, N, H, Dh).transpose(0, 2, 1, 3)
    k = (x2 @ wk.T).reshape(B, N, H, Dh).transpose(0, 2, 1, 3)
    v = (memory_block @ wv.T).reshape(K, H, N, dv)
    dots = jnp.einsum('bhnd,bhmd->bhnm', q, k) * (Dh ** -0.5)
    attn = jax.nn.softmax(dots, axis=-1)
    mba = jnp.einsum('bhnm,bhmv->bhnv', attn, v).reshape(B, -1)   # B == K pairing
    attention = jax.nn.sigmoid(jnp.einsum('btd,kd->btk', x1, mba) / math.sqrt(D))
    return jnp.einsum('btk,kd->btd', attention, memory_block)


if __name__ == "__main__":
    # Small shapes consistent with the module's constraints.
    B = 2                    # batch
    NUMS = 2                 # memory slots (== B, see layout note)
    HEADS = 2
    DIM_HEAD = 16
    DIM = HEADS * DIM_HEAD   # 32  (dim == heads * dim_head)
    SEQ = 8                  # dim_head % seq == 0

    key = jax.random.PRNGKey(0)
    k1, k2, k3, k4, k5, k6 = jax.random.split(key, 6)
    stdv = 1.0 / math.sqrt(DIM)
    memory_block = jax.random.uniform(k1, (NUMS, DIM), jnp.float32, -stdv, stdv)
    wq = jax.random.uniform(k2, (HEADS * DIM_HEAD, DIM), jnp.float32, -stdv, stdv)
    wk = jax.random.uniform(k3, (HEADS * DIM_HEAD, DIM), jnp.float32, -stdv, stdv)
    wv = jax.random.uniform(k4, (HEADS * DIM_HEAD, DIM), jnp.float32, -stdv, stdv)
    x1 = jax.random.normal(k5, (B, SEQ, DIM), jnp.float32)
    x2 = jax.random.normal(k6, (B, SEQ, DIM), jnp.float32)

    out = memory_unit_forward(x1, x2, memory_block, wq, wk, wv,
                              heads=HEADS, dim_head=DIM_HEAD)
    out = jax.block_until_ready(out)

    ref = memory_unit_reference(x1, x2, memory_block, wq, wk, wv,
                                heads=HEADS, dim_head=DIM_HEAD)
    assert out.shape == (B, SEQ, DIM)
    err = float(jnp.max(jnp.abs(out - ref)))
    # Tolerance covers bf16 MXU operands (f32 accumulate) and the approx
    # reciprocal in the softmax; measured error is ~1e-3 at these magnitudes.
    assert jnp.allclose(out, ref, atol=5e-3, rtol=5e-3), f"max abs err {err}"
    print("KERNEL_OK")
</pallas_src>

<mosaic_0001>
module attributes {stable_mosaic.version = 11 : i64} {
  func.func @_memory_unit_kernel(%arg0: memref<16x32xf32, #tpu.memory_space<vmem>>, %arg1: memref<16x32xf32, #tpu.memory_space<vmem>>, %arg2: memref<2x32xf32, #tpu.memory_space<vmem>>, %arg3: memref<32x32xf32, #tpu.memory_space<vmem>>, %arg4: memref<32x32xf32, #tpu.memory_space<vmem>>, %arg5: memref<32x32xf32, #tpu.memory_space<vmem>>, %arg6: memref<16x32xf32, #tpu.memory_space<vmem>>) attributes {dimension_semantics = [], scalar_prefetch = 0 : i64, scratch_operands = 0 : i64, tpu.core_type = #tpu.core_type<tc>} {
    %c0 = arith.constant 0 : index
    %c0_0 = arith.constant 0 : index
    %0 = vector.load %arg0[%c0, %c0_0] : memref<16x32xf32, #tpu.memory_space<vmem>>, vector<16x32xf32>
    %1 = arith.truncf %0 : vector<16x32xf32> to vector<16x32xbf16>
    %c0_1 = arith.constant 0 : index
    %c0_2 = arith.constant 0 : index
    %2 = vector.load %arg1[%c0_1, %c0_2] : memref<16x32xf32, #tpu.memory_space<vmem>>, vector<16x32xf32>
    %3 = arith.truncf %2 : vector<16x32xf32> to vector<16x32xbf16>
    %c0_3 = arith.constant 0 : index
    %c0_4 = arith.constant 0 : index
    %4 = vector.load %arg2[%c0_3, %c0_4] : memref<2x32xf32, #tpu.memory_space<vmem>>, vector<2x32xf32>
    %5 = arith.truncf %4 : vector<2x32xf32> to vector<2x32xbf16>
    %c0_5 = arith.constant 0 : index
    %c0_6 = arith.constant 0 : index
    %6 = vector.load %arg3[%c0_5, %c0_6] : memref<32x32xf32, #tpu.memory_space<vmem>>, vector<32x32xf32>
    %7 = arith.truncf %6 : vector<32x32xf32> to vector<32x32xbf16>
    %c0_7 = arith.constant 0 : index
    %c0_8 = arith.constant 0 : index
    %8 = vector.load %arg4[%c0_7, %c0_8] : memref<32x32xf32, #tpu.memory_space<vmem>>, vector<32x32xf32>
    %9 = arith.truncf %8 : vector<32x32xf32> to vector<32x32xbf16>
    %c0_9 = arith.constant 0 : index
    %c0_10 = arith.constant 0 : index
    %10 = vector.load %arg5[%c0_9, %c0_10] : memref<32x32xf32, #tpu.memory_space<vmem>>, vector<32x32xf32>
    %11 = arith.truncf %10 : vector<32x32xf32> to vector<32x32xbf16>
    %cst = arith.constant dense<0.000000e+00> : vector<16x32xf32>
    %12 = tpu.matmul %1, %7, %cst {dimension_numbers = #tpu.dot_dimension_numbers<[1], [1], [0], [0], [0, 0, 1, 0], [], []>} : vector<16x32xbf16>, vector<32x32xbf16>, vector<16x32xf32> -> vector<16x32xf32>
    %cst_11 = arith.constant 2.500000e-01 : f32
    %13 = vector.broadcast %cst_11 : f32 to vector<16x32xf32>
    %14 = arith.mulf %12, %13 : vector<16x32xf32>
    %cst_12 = arith.constant dense<0.000000e+00> : vector<16x32xf32>
    %15 = tpu.matmul %3, %9, %cst_12 {dimension_numbers = #tpu.dot_dimension_numbers<[1], [1], [0], [0], [0, 0, 1, 0], [], []>} : vector<16x32xbf16>, vector<32x32xbf16>, vector<16x32xf32> -> vector<16x32xf32>
    %cst_13 = arith.constant dense<0.000000e+00> : vector<2x32xf32>
    %16 = tpu.matmul %5, %11, %cst_13 {dimension_numbers = #tpu.dot_dimension_numbers<[1], [1], [0], [0], [0, 0, 1, 0], [], []>} : vector<2x32xbf16>, vector<32x32xbf16>, vector<2x32xf32> -> vector<2x32xf32>
    %cst_14 = arith.constant 0.176776692 : f32
    %17 = vector.broadcast %cst_14 : f32 to vector<2x32xf32>
    %18 = arith.mulf %16, %17 : vector<2x32xf32>
    %19 = arith.truncf %14 : vector<16x32xf32> to vector<16x32xbf16>
    %20 = arith.truncf %15 : vector<16x32xf32> to vector<16x32xbf16>
    %21 = arith.truncf %18 : vector<2x32xf32> to vector<2x32xbf16>
    %22 = tpu.iota {dimensions = array<i32: 0>} : vector<16x16xi32>
    %23 = tpu.iota {dimensions = array<i32: 1>} : vector<16x16xi32>
    %c3_i32 = arith.constant 3 : i32
    %24 = vector.broadcast %c3_i32 : i32 to vector<16x16xi32>
    %25 = arith.shrsi %22, %24 : vector<16x16xi32>
    %c3_i32_15 = arith.constant 3 : i32
    %26 = vector.broadcast %c3_i32_15 : i32 to vector<16x16xi32>
    %27 = arith.shrsi %23, %26 : vector<16x16xi32>
    %28 = arith.cmpi eq, %25, %27 : vector<16x16xi32>
    %29 = tpu.iota {dimensions = array<i32: 0>} : vector<16x2xi32>
    %30 = tpu.iota {dimensions = array<i32: 1>} : vector<16x2xi32>
    %c3_i32_16 = arith.constant 3 : i32
    %31 = vector.broadcast %c3_i32_16 : i32 to vector<16x2xi32>
    %32 = arith.shrsi %29, %31 : vector<16x2xi32>
    %33 = arith.cmpi eq, %32, %30 : vector<16x2xi32>
    %34 = arith.extui %33 : vector<16x2xi1> to vector<16x2xi32>
    %35 = arith.sitofp %34 : vector<16x2xi32> to vector<16x2xf32>
    %36 = arith.truncf %35 : vector<16x2xf32> to vector<16x2xbf16>
    %37 = tpu.iota {dimensions = array<i32: 0>} : vector<2x16xi32>
    %38 = tpu.iota {dimensions = array<i32: 1>} : vector<2x16xi32>
    %c3_i32_17 = arith.constant 3 : i32
    %39 = vector.broadcast %c3_i32_17 : i32 to vector<2x16xi32>
    %40 = arith.shrsi %38, %39 : vector<2x16xi32>
    %41 = arith.cmpi eq, %40, %37 : vector<2x16xi32>
    %42 = arith.extui %41 : vector<2x16xi1> to vector<2x16xi32>
    %43 = arith.sitofp %42 : vector<2x16xi32> to vector<2x16xf32>
    %44 = arith.truncf %43 : vector<2x16xf32> to vector<2x16xbf16>
    %45 = tpu.iota {dimensions = array<i32: 0>} : vector<16x16xi32>
    %46 = tpu.iota {dimensions = array<i32: 1>} : vector<16x16xi32>
    %c1_i32 = arith.constant 1 : i32
    %47 = vector.broadcast %c1_i32 : i32 to vector<16x16xi32>
    %48 = arith.shrsi %46, %47 : vector<16x16xi32>
    %c7_i32 = arith.constant 7 : i32
    %49 = vector.broadcast %c7_i32 : i32 to vector<16x16xi32>
    %50 = arith.andi %45, %49 : vector<16x16xi32>
    %51 = arith.cmpi eq, %48, %50 : vector<16x16xi32>
    %52 = arith.extui %51 : vector<16x16xi1> to vector<16x16xi32>
    %53 = arith.sitofp %52 : vector<16x16xi32> to vector<16x16xf32>
    %54 = arith.truncf %53 : vector<16x16xf32> to vector<16x16xbf16>
    %55 = tpu.iota {dimensions = array<i32: 0>} : vector<16x16xi32>
    %56 = tpu.iota {dimensions = array<i32: 1>} : vector<16x16xi32>
    %c1_i32_18 = arith.constant 1 : i32
    %57 = vector.broadcast %c1_i32_18 : i32 to vector<16x16xi32>
    %58 = arith.andi %55, %57 : vector<16x16xi32>
    %c1_i32_19 = arith.constant 1 : i32
    %59 = vector.broadcast %c1_i32_19 : i32 to vector<16x16xi32>
    %60 = arith.andi %56, %59 : vector<16x16xi32>
    %61 = arith.cmpi eq, %58, %60 : vector<16x16xi32>
    %62 = arith.extui %61 : vector<16x16xi1> to vector<16x16xi32>
    %63 = arith.sitofp %62 : vector<16x16xi32> to vector<16x16xf32>
    %64 = arith.truncf %63 : vector<16x16xf32> to vector<16x16xbf16>
    %cst_20 = arith.constant 0.000000e+00 : f32
    %65 = vector.broadcast %cst_20 : f32 to vector<16x2xf32>
    %66 = vector.extract_strided_slice %19 {offsets = [0, 0], sizes = [16, 16], strides = [1, 1]} : vector<16x32xbf16> to vector<16x16xbf16>
    %67 = vector.extract_strided_slice %20 {offsets = [0, 0], sizes = [16, 16], strides = [1, 1]} : vector<16x32xbf16> to vector<16x16xbf16>
    %68 = vector.extract_strided_slice %21 {offsets = [0, 0], sizes = [2, 16], strides = [1, 1]} : vector<2x32xbf16> to vector<2x16xbf16>
    %cst_21 = arith.constant dense<0.000000e+00> : vector<16x16xf32>
    %69 = tpu.matmul %66, %67, %cst_21 {dimension_numbers = #tpu.dot_dimension_numbers<[1], [1], [0], [0], [0, 0, 1, 0], [], []>} : vector<16x16xbf16>, vector<16x16xbf16>, vector<16x16xf32> -> vector<16x16xf32>
    %cst_22 = arith.constant -1.000000e+30 : f32
    %70 = vector.broadcast %cst_22 : f32 to vector<16x16xf32>
    %71 = arith.select %28, %69, %70 : vector<16x16xi1>, vector<16x16xf32>
    %cst_23 = arith.constant dense<0xFF800000> : vector<16xf32>
    %72 = vector.multi_reduction <maximumf>, %71, %cst_23 [1] : vector<16x16xf32> to vector<16xf32>
    %73 = vector.shape_cast %72 : vector<16xf32> to vector<16x1xf32>
    %74 = vector.broadcast %73 : vector<16x1xf32> to vector<16x16xf32>
    %75 = arith.subf %71, %74 : vector<16x16xf32>
    %76 = math.exp %75 : vector<16x16xf32>
    %cst_24 = arith.constant dense<0.000000e+00> : vector<16xf32>
    %77 = vector.multi_reduction <add>, %76, %cst_24 [1] : vector<16x16xf32> to vector<16xf32>
    %78 = vector.shape_cast %77 : vector<16xf32> to vector<16x1xf32>
    %79 = tpu.reciprocal %78 {approx = true} : vector<16x1xf32> -> vector<16x1xf32>
    %80 = vector.broadcast %79 : vector<16x1xf32> to vector<16x16xf32>
    %81 = arith.mulf %76, %80 : vector<16x16xf32>
    %82 = arith.truncf %81 : vector<16x16xf32> to vector<16x16xbf16>
    %cst_25 = arith.constant dense<0.000000e+00> : vector<16x16xf32>
    %83 = tpu.matmul %82, %54, %cst_25 {dimension_numbers = #tpu.dot_dimension_numbers<[1], [0], [0], [1], [0, 0, 1, 1], [], []>} : vector<16x16xbf16>, vector<16x16xbf16>, vector<16x16xf32> -> vector<16x16xf32>
    %cst_26 = arith.constant dense<0.000000e+00> : vector<16x16xf32>
    %84 = tpu.matmul %36, %68, %cst_26 {dimension_numbers = #tpu.dot_dimension_numbers<[1], [0], [0], [1], [0, 0, 1, 1], [], []>} : vector<16x2xbf16>, vector<2x16xbf16>, vector<16x16xf32> -> vector<16x16xf32>
    %85 = arith.mulf %83, %84 : vector<16x16xf32>
    %86 = arith.truncf %85 : vector<16x16xf32> to vector<16x16xbf16>
    %cst_27 = arith.constant dense<0.000000e+00> : vector<16x16xf32>
    %87 = tpu.matmul %86, %64, %cst_27 {dimension_numbers = #tpu.dot_dimension_numbers<[1], [0], [0], [1], [0, 0, 1, 1], [], []>} : vector<16x16xbf16>, vector<16x16xbf16>, vector<16x16xf32> -> vector<16x16xf32>
    %88 = arith.mulf %87, %53 : vector<16x16xf32>
    %89 = arith.truncf %88 : vector<16x16xf32> to vector<16x16xbf16>
    %cst_28 = arith.constant dense<0.000000e+00> : vector<2x16xf32>
    %90 = tpu.matmul %44, %89, %cst_28 {dimension_numbers = #tpu.dot_dimension_numbers<[1], [0], [0], [1], [0, 0, 1, 1], [], []>} : vector<2x16xbf16>, vector<16x16xbf16>, vector<2x16xf32> -> vector<2x16xf32>
    %91 = vector.extract_strided_slice %1 {offsets = [0, 0], sizes = [16, 16], strides = [1, 1]} : vector<16x32xbf16> to vector<16x16xbf16>
    %92 = arith.truncf %90 : vector<2x16xf32> to vector<2x16xbf16>
    %cst_29 = arith.constant dense<0.000000e+00> : vector<16x2xf32>
    %93 = tpu.matmul %91, %92, %cst_29 {dimension_numbers = #tpu.dot_dimension_numbers<[1], [1], [0], [0], [0, 0, 1, 0], [], []>} : vector<16x16xbf16>, vector<2x16xbf16>, vector<16x2xf32> -> vector<16x2xf32>
    %94 = arith.addf %65, %93 : vector<16x2xf32>
    %95 = vector.extract_strided_slice %19 {offsets = [0, 16], sizes = [16, 16], strides = [1, 1]} : vector<16x32xbf16> to vector<16x16xbf16>
    %96 = vector.extract_strided_slice %20 {offsets = [0, 16], sizes = [16, 16], strides = [1, 1]} : vector<16x32xbf16> to vector<16x16xbf16>
    %97 = vector.extract_strided_slice %21 {offsets = [0, 16], sizes = [2, 16], strides = [1, 1]} : vector<2x32xbf16> to vector<2x16xbf16>
    %cst_30 = arith.constant dense<0.000000e+00> : vector<16x16xf32>
    %98 = tpu.matmul %95, %96, %cst_30 {dimension_numbers = #tpu.dot_dimension_numbers<[1], [1], [0], [0], [0, 0, 1, 0], [], []>} : vector<16x16xbf16>, vector<16x16xbf16>, vector<16x16xf32> -> vector<16x16xf32>
    %cst_31 = arith.constant -1.000000e+30 : f32
    %99 = vector.broadcast %cst_31 : f32 to vector<16x16xf32>
    %100 = arith.select %28, %98, %99 : vector<16x16xi1>, vector<16x16xf32>
    %cst_32 = arith.constant dense<0xFF800000> : vector<16xf32>
    %101 = vector.multi_reduction <maximumf>, %100, %cst_32 [1] : vector<16x16xf32> to vector<16xf32>
    %102 = vector.shape_cast %101 : vector<16xf32> to vector<16x1xf32>
    %103 = vector.broadcast %102 : vector<16x1xf32> to vector<16x16xf32>
    %104 = arith.subf %100, %103 : vector<16x16xf32>
    %105 = math.exp %104 : vector<16x16xf32>
    %cst_33 = arith.constant dense<0.000000e+00> : vector<16xf32>
    %106 = vector.multi_reduction <add>, %105, %cst_33 [1] : vector<16x16xf32> to vector<16xf32>
    %107 = vector.shape_cast %106 : vector<16xf32> to vector<16x1xf32>
    %108 = tpu.reciprocal %107 {approx = true} : vector<16x1xf32> -> vector<16x1xf32>
    %109 = vector.broadcast %108 : vector<16x1xf32> to vector<16x16xf32>
    %110 = arith.mulf %105, %109 : vector<16x16xf32>
    %111 = arith.truncf %110 : vector<16x16xf32> to vector<16x16xbf16>
    %cst_34 = arith.constant dense<0.000000e+00> : vector<16x16xf32>
    %112 = tpu.matmul %111, %54, %cst_34 {dimension_numbers = #tpu.dot_dimension_numbers<[1], [0], [0], [1], [0, 0, 1, 1], [], []>} : vector<16x16xbf16>, vector<16x16xbf16>, vector<16x16xf32> -> vector<16x16xf32>
    %cst_35 = arith.constant dense<0.000000e+00> : vector<16x16xf32>
    %113 = tpu.matmul %36, %97, %cst_35 {dimension_numbers = #tpu.dot_dimension_numbers<[1], [0], [0], [1], [0, 0, 1, 1], [], []>} : vector<16x2xbf16>, vector<2x16xbf16>, vector<16x16xf32> -> vector<16x16xf32>
    %114 = arith.mulf %112, %113 : vector<16x16xf32>
    %115 = arith.truncf %114 : vector<16x16xf32> to vector<16x16xbf16>
    %cst_36 = arith.constant dense<0.000000e+00> : vector<16x16xf32>
    %116 = tpu.matmul %115, %64, %cst_36 {dimension_numbers = #tpu.dot_dimension_numbers<[1], [0], [0], [1], [0, 0, 1, 1], [], []>} : vector<16x16xbf16>, vector<16x16xbf16>, vector<16x16xf32> -> vector<16x16xf32>
    %117 = arith.mulf %116, %53 : vector<16x16xf32>
    %118 = arith.truncf %117 : vector<16x16xf32> to vector<16x16xbf16>
    %cst_37 = arith.constant dense<0.000000e+00> : vector<2x16xf32>
    %119 = tpu.matmul %44, %118, %cst_37 {dimension_numbers = #tpu.dot_dimension_numbers<[1], [0], [0], [1], [0, 0, 1, 1], [], []>} : vector<2x16xbf16>, vector<16x16xbf16>, vector<2x16xf32> -> vector<2x16xf32>
    %120 = vector.extract_strided_slice %1 {offsets = [0, 16], sizes = [16, 16], strides = [1, 1]} : vector<16x32xbf16> to vector<16x16xbf16>
    %121 = arith.truncf %119 : vector<2x16xf32> to vector<2x16xbf16>
    %cst_38 = arith.constant dense<0.000000e+00> : vector<16x2xf32>
    %122 = tpu.matmul %120, %121, %cst_38 {dimension_numbers = #tpu.dot_dimension_numbers<[1], [1], [0], [0], [0, 0, 1, 0], [], []>} : vector<16x16xbf16>, vector<2x16xbf16>, vector<16x2xf32> -> vector<16x2xf32>
    %123 = arith.addf %94, %122 : vector<16x2xf32>
    %124 = math.absf %123 : vector<16x2xf32>
    %cst_39 = arith.constant 0.000000e+00 : f32
    %125 = vector.broadcast %cst_39 : f32 to vector<16x2xf32>
    %126 = arith.subf %125, %124 : vector<16x2xf32>
    %127 = math.exp %126 : vector<16x2xf32>
    %cst_40 = arith.constant 1.000000e+00 : f32
    %128 = vector.broadcast %cst_40 : f32 to vector<16x2xf32>
    %129 = arith.addf %128, %127 : vector<16x2xf32>
    %cst_41 = arith.constant 1.000000e+00 : f32
    %130 = vector.broadcast %cst_41 : f32 to vector<16x2xf32>
    %131 = arith.divf %130, %129 : vector<16x2xf32>
    %cst_42 = arith.constant 0.000000e+00 : f32
    %132 = vector.broadcast %cst_42 : f32 to vector<16x2xf32>
    %133 = arith.cmpf oge, %123, %132 : vector<16x2xf32>
    %134 = arith.mulf %127, %131 : vector<16x2xf32>
    %135 = arith.select %133, %131, %134 : vector<16x2xi1>, vector<16x2xf32>
    %136 = arith.truncf %135 : vector<16x2xf32> to vector<16x2xbf16>
    %cst_43 = arith.constant dense<0.000000e+00> : vector<16x32xf32>
    %137 = tpu.matmul %136, %5, %cst_43 {dimension_numbers = #tpu.dot_dimension_numbers<[1], [0], [0], [1], [0, 0, 1, 1], [], []>} : vector<16x2xbf16>, vector<2x32xbf16>, vector<16x32xf32> -> vector<16x32xf32>
    %c0_44 = arith.constant 0 : index
    %c0_45 = arith.constant 0 : index
    %138 = vector.load %arg6[%c0_44, %c0_45] : memref<16x32xf32, #tpu.memory_space<vmem>>, vector<16x32xf32>
    tpu.vector_store %arg6[%c0_44, %c0_45], %137 {strides = array<i32>} : memref<16x32xf32, #tpu.memory_space<vmem>>, vector<16x32xf32>,
    return
  }
}

</mosaic_0001>

<llo_original>
// kernel: tpu_custom_call.1
$region0: #{tpu_custom_call.1}
  #allocation0 [shape = 'u32[]', space=smem, size = 0x4, offset = 0x4, fixed_abs, tag = 'smem constant byte address 0x4 - core index']
  #allocation1 [shape = 'u32[144,128]{1,0:T(1,128)}', space=vmem, size = 0x12000, scoped, tag = 'internal scratch']
  %s0 = inlined_call_operand.hbm [shape: f32[16,32], index: 0, kind: input, shape index: {}]
  %s1 = inlined_call_operand.hbm [shape: f32[16,32], index: 1, kind: input, shape index: {}]
  %s2 = inlined_call_operand.vmem [shape: f32[2,32], index: 2, kind: input, shape index: {}]
  %s3 = inlined_call_operand.hbm [shape: f32[32,32], index: 3, kind: input, shape index: {}]
  %s4 = inlined_call_operand.hbm [shape: f32[32,32], index: 4, kind: input, shape index: {}]
  %s5 = inlined_call_operand.hbm [shape: f32[32,32], index: 5, kind: input, shape index: {}]
  %s6 = inlined_call_operand.hbm [shape: f32[16,32], index: 6, kind: output, shape index: {}]
  %s7 = sld [smem:[#allocation0]]
  $region54: #{tpu_custom_call.1} parent=0
    _
  %s9 = ssub.s32 1, %s7
  %s10 = scalar_select 0, %s9, %s7
  $region1: #{tpu_custom_call.1} parent=0
    #allocation2 [shape = 'u8[8192]{0}', space=vmem, size = 0x2000, scoped, tag = 'input window, operand 0, single buffered']
    #allocation3 [shape = 's32[1]{0}', space=sflag, size = 0x4, scoped, tag = 'scoped memory for tpu_custom_call.1']
    #allocation4 [shape = 's32[1]{0}', space=sflag, size = 0x4, scoped, tag = 'scoped memory for tpu_custom_call.1']
    #allocation5 [shape = 'u8[8192]{0}', space=vmem, size = 0x2000, scoped, tag = 'input window, operand 1, single buffered']
    #allocation6 [shape = 's32[1]{0}', space=sflag, size = 0x4, scoped, tag = 'scoped memory for tpu_custom_call.1']
    #allocation7 [shape = 'u8[16384]{0}', space=vmem, size = 0x4000, scoped, tag = 'input window, operand 3, single buffered']
    #allocation8 [shape = 'u8[16384]{0}', space=vmem, size = 0x4000, scoped, tag = 'input window, operand 4, single buffered']
    #allocation9 [shape = 's32[1]{0}', space=sflag, size = 0x4, scoped, tag = 'scoped memory for tpu_custom_call.1']
    #allocation10 [shape = 'u8[16384]{0}', space=vmem, size = 0x4000, scoped, tag = 'input window, operand 5, single buffered']
    #allocation11 [shape = 'u8[8192]{0}', space=vmem, size = 0x2000, scoped, tag = 'output window, operand 0, single buffered']
    %11 = vsyncpa [#allocation3], 0
    %12 = vsyncpa [#allocation6], 0
    %13 = vsyncpa [#allocation9], 0
    %14 = vsyncpa [#allocation4], 0
    // Predicated region
    $region2: #{tpu_custom_call.1} parent=1 // pred_check
      _
    $region3: #{tpu_custom_call.1} parent=1 // pred_check_branch
      %16 = sbr.rel (0) target = $region5
    $region4: #{tpu_custom_call.1} parent=1 // pred_region
      %s18 = ssub.s32 256, 256
      %19 = vsyncadd [#allocation3], %s18
      %s20 = sshll.u32 [#allocation2], 4
      %s21 = int_to_ptr.vmem [resolvable:$true] %s20
      %26 = dma.hbm_to_vmem [thread:$0]  %s0, 256, %s21, [#allocation3], 128, 128, 8
    $region5: #{tpu_custom_call.1} parent=1 // pred_fallthru
      _
    // Predicated region
    $region6: #{tpu_custom_call.1} parent=1 // pred_check
      _
    $region7: #{tpu_custom_call.1} parent=1 // pred_check_branch
      %28 = sbr.rel (0) target = $region9
    $region8: #{tpu_custom_call.1} parent=1 // pred_region
      %s30 = ssub.s32 256, 256
      %31 = vsyncadd [#allocation6], %s30
      %s32 = sshll.u32 [#allocation5], 4
      %s33 = int_to_ptr.vmem [resolvable:$true] %s32
      %38 = dma.hbm_to_vmem [thread:$0]  %s1, 256, %s33, [#allocation6], 128, 128, 8
    $region9: #{tpu_custom_call.1} parent=1 // pred_fallthru
      _
    // Predicated region
    $region10: #{tpu_custom_call.1} parent=1 // pred_check
      _
    $region11: #{tpu_custom_call.1} parent=1 // pred_check_branch
      %40 = sbr.rel (0) target = $region13
    $region12: #{tpu_custom_call.1} parent=1 // pred_region
      _
    $region13: #{tpu_custom_call.1} parent=1 // pred_fallthru
      _
    // Predicated region
    $region14: #{tpu_custom_call.1} parent=1 // pred_check
      _
    $region15: #{tpu_custom_call.1} parent=1 // pred_check_branch
      %42 = sbr.rel (0) target = $region17
    $region16: #{tpu_custom_call.1} parent=1 // pred_region
      %s44 = ssub.s32 512, 512
      %45 = vsyncadd [#allocation6], %s44
      %s46 = sshll.u32 [#allocation7], 4
      %s47 = int_to_ptr.vmem [resolvable:$true] %s46
      %52 = dma.hbm_to_vmem [thread:$0]  %s3, 512, %s47, [#allocation6], 128, 128, 8
    $region17: #{tpu_custom_call.1} parent=1 // pred_fallthru
      _
    // Predicated region
    $region18: #{tpu_custom_call.1} parent=1 // pred_check
      _
    $region19: #{tpu_custom_call.1} parent=1 // pred_check_branch
      %54 = sbr.rel (0) target = $region21
    $region20: #{tpu_custom_call.1} parent=1 // pred_region
      %s56 = ssub.s32 512, 512
      %57 = vsyncadd [#allocation9], %s56
      %s58 = sshll.u32 [#allocation8], 4
      %s59 = int_to_ptr.vmem [resolvable:$true] %s58
      %64 = dma.hbm_to_vmem [thread:$0]  %s4, 512, %s59, [#allocation9], 128, 128, 8
    $region21: #{tpu_custom_call.1} parent=1 // pred_fallthru
      _
    // Predicated region
    $region22: #{tpu_custom_call.1} parent=1 // pred_check
      _
    $region23: #{tpu_custom_call.1} parent=1 // pred_check_branch
      %66 = sbr.rel (0) target = $region25
    $region24: #{tpu_custom_call.1} parent=1 // pred_region
      %s68 = ssub.s32 512, 512
      %69 = vsyncadd [#allocation9], %s68
      %s70 = sshll.u32 [#allocation10], 4
      %s71 = int_to_ptr.vmem [resolvable:$true] %s70
      %76 = dma.hbm_to_vmem [thread:$0]  %s5, 512, %s71, [#allocation9], 128, 128, 8
    $region25: #{tpu_custom_call.1} parent=1 // pred_fallthru
      _
    // Predicated region
    $region26: #{tpu_custom_call.1} parent=1 // pred_check
      _
    $region27: #{tpu_custom_call.1} parent=1 // pred_check_branch
      %78 = sbr.rel (0) target = $region29
    $region28: #{tpu_custom_call.1} parent=1 // pred_region
      %79 = dma.done [#allocation3], 256
    $region29: #{tpu_custom_call.1} parent=1 // pred_fallthru
      _
    // Predicated region
    $region30: #{tpu_custom_call.1} parent=1 // pred_check
      _
    $region31: #{tpu_custom_call.1} parent=1 // pred_check_branch
      %81 = sbr.rel (0) target = $region33
    $region32: #{tpu_custom_call.1} parent=1 // pred_region
      %82 = dma.done [#allocation6], 256
    $region33: #{tpu_custom_call.1} parent=1 // pred_fallthru
      _
    // Predicated region
    $region34: #{tpu_custom_call.1} parent=1 // pred_check
      _
    $region35: #{tpu_custom_call.1} parent=1 // pred_check_branch
      %84 = sbr.rel (0) target = $region37
    $region36: #{tpu_custom_call.1} parent=1 // pred_region
      %85 = dma.done [#allocation6], 512
    $region37: #{tpu_custom_call.1} parent=1 // pred_fallthru
      _
    // Predicated region
    $region38: #{tpu_custom_call.1} parent=1 // pred_check
      _
    $region39: #{tpu_custom_call.1} parent=1 // pred_check_branch
      %87 = sbr.rel (0) target = $region41
    $region40: #{tpu_custom_call.1} parent=1 // pred_region
      %88 = dma.done [#allocation9], 512
    $region41: #{tpu_custom_call.1} parent=1 // pred_fallthru
      _
    // Predicated region
    $region42: #{tpu_custom_call.1} parent=1 // pred_check
      _
    $region43: #{tpu_custom_call.1} parent=1 // pred_check_branch
      %90 = sbr.rel (0) target = $region45
    $region44: #{tpu_custom_call.1} parent=1 // pred_region
      %91 = dma.done [#allocation9], 512
    $region45: #{tpu_custom_call.1} parent=1 // pred_fallthru
      _
    %v93 = vld [vmem:[#allocation2] sm:$0xff]
    %v94 = vld [vmem:[#allocation2 + $0x8] sm:$0xff]
    %v95 = vpack.c.bf16 %v94, %v93
    %v96 = vld [vmem:[#allocation5] sm:$0xff]
    %v97 = vld [vmem:[#allocation5 + $0x8] sm:$0xff]
    %v98 = vpack.c.bf16 %v97, %v96
    %v99 = vld [vmem:[%s2] sm:$0x3]
    %v100 = vpack.c.bf16 %v99, %v99
    %v101 = vld [vmem:[#allocation7] sm:$0xff]
    %v102 = vld [vmem:[#allocation7 + $0x8] sm:$0xff]
    %v103 = vld [vmem:[#allocation7 + $0x10] sm:$0xff]
    %v104 = vld [vmem:[#allocation7 + $0x18] sm:$0xff]
    %v105 = vpack.c.bf16 %v102, %v101
    %v106 = vpack.c.bf16 %v104, %v103
    %v107 = vld [vmem:[#allocation8] sm:$0xff]
    %v108 = vld [vmem:[#allocation8 + $0x8] sm:$0xff]
    %v109 = vld [vmem:[#allocation8 + $0x10] sm:$0xff]
    %v110 = vld [vmem:[#allocation8 + $0x18] sm:$0xff]
    %v111 = vpack.c.bf16 %v108, %v107
    %v112 = vpack.c.bf16 %v110, %v109
    %v113 = vld [vmem:[#allocation10] sm:$0xff]
    %v114 = vld [vmem:[#allocation10 + $0x8] sm:$0xff]
    %v115 = vld [vmem:[#allocation10 + $0x10] sm:$0xff]
    %v116 = vld [vmem:[#allocation10 + $0x18] sm:$0xff]
    %v117 = vpack.c.bf16 %v114, %v113
    %v118 = vpack.c.bf16 %v116, %v115
    %vm119 = vcmask 261120
    %v121 = vsel %vm119, %v95, 0
    %v124 = vsel %vm119, %v105, 0
    %v127 = vsel %vm119, %v106, 0
    %129 = vmatprep.subr.bf16.mxu0 0
    %130 = vmatpush1.bf16.xpose.msra.mxu0 0
    %131 = vmatprep.subr.bf16.mxu0 0
    %132 = vmatpush1.bf16.xpose.msra.mxu0 0
    %133 = vmatprep.subr.bf16.mxu0 0
    %134 = vmatpush1.bf16.xpose.msra.mxu0 0
    %135 = vmatprep.subr.bf16.mxu0 0
    %136 = vmatpush1.bf16.xpose.msra.mxu0 0
    %137 = vmatprep.subr.bf16.mxu0 0
    %138 = vmatpush1.bf16.xpose.msra.mxu0 0
    %139 = vmatprep.subr.bf16.mxu0 0
    %140 = vmatpush1.bf16.xpose.msra.mxu0 0
    %141 = vmatprep.subr.bf16.mxu0 0
    %142 = vmatpush1.bf16.xpose.msra.mxu0 %v127
    %143 = vmatprep.subr.bf16.mxu0 0
    %144 = vmatpush1.bf16.xpose.msra.mxu0 %v124
    %145 = vmatprep.subr.bf16.mxu0 0
    %146 = vmatpush2.bf16.xpose.msra.mxu0 0
    %147 = vmatprep.subr.bf16.mxu0 0
    %148 = vmatpush2.bf16.xpose.msra.mxu0 0
    %149 = vmatprep.subr.bf16.mxu0 0
    %150 = vmatpush2.bf16.xpose.msra.mxu0 0
    %151 = vmatprep.subr.bf16.mxu0 0
    %152 = vmatpush2.bf16.xpose.msra.mxu0 0
    %153 = vmatprep.subr.bf16.mxu0 0
    %154 = vmatpush2.bf16.xpose.msra.mxu0 0
    %155 = vmatprep.subr.bf16.mxu0 0
    %156 = vmatpush2.bf16.xpose.msra.mxu0 0
    %157 = vmatprep.subr.bf16.mxu0 0
    %158 = vmatpush2.bf16.xpose.msra.mxu0 0
    %159 = vmatprep.subr.bf16.mxu0 0
    %160 = vmatpush2.bf16.xpose.msra.mxu0 0
    %161 = vmatprep.mubr.bf16.mxu0 0
    %162 = vmatmul.mubr.bf16.gmra.mxu0 %v121
    %v163 = vpop.f32.mrf.mxu0
    %v164 = vadd.f32 0.0, %v163
    %v165 = vpop.f32.mrf.mxu0
    %v166 = vpop.f32.mrf.mxu0
    %v167 = vadd.f32 0.0, %v166
    %v168 = vpop.f32.mrf.mxu0
    %169 = vdwg.mxu0
    %v170 = vmul.f32 %v164, 0.25
    %v171 = vmul.f32 %v167, 0.25
    %v173 = vsel %vm119, %v98, 0
    %v176 = vsel %vm119, %v111, 0
    %v179 = vsel %vm119, %v112, 0
    %181 = vmatprep.subr.bf16.mxu0 0
    %182 = vmatpush1.bf16.xpose.msra.mxu0 0
    %183 = vmatprep.subr.bf16.mxu0 0
    %184 = vmatpush1.bf16.xpose.msra.mxu0 0
    %185 = vmatprep.subr.bf16.mxu0 0
    %186 = vmatpush1.bf16.xpose.msra.mxu0 0
    %187 = vmatprep.subr.bf16.mxu0 0
    %188 = vmatpush1.bf16.xpose.msra.mxu0 0
    %189 = vmatprep.subr.bf16.mxu0 0
    %190 = vmatpush1.bf16.xpose.msra.mxu0 0
    %191 = vmatprep.subr.bf16.mxu0 0
    %192 = vmatpush1.bf16.xpose.msra.mxu0 0
    %193 = vmatprep.subr.bf16.mxu0 0
    %194 = vmatpush1.bf16.xpose.msra.mxu0 %v179
    %195 = vmatprep.subr.bf16.mxu0 0
    %196 = vmatpush1.bf16.xpose.msra.mxu0 %v176
    %197 = vmatprep.subr.bf16.mxu0 0
    %198 = vmatpush2.bf16.xpose.msra.mxu0 0
    %199 = vmatprep.subr.bf16.mxu0 0
    %200 = vmatpush2.bf16.xpose.msra.mxu0 0
    %201 = vmatprep.subr.bf16.mxu0 0
    %202 = vmatpush2.bf16.xpose.msra.mxu0 0
    %203 = vmatprep.subr.bf16.mxu0 0
    %204 = vmatpush2.bf16.xpose.msra.mxu0 0
    %205 = vmatprep.subr.bf16.mxu0 0
    %206 = vmatpush2.bf16.xpose.msra.mxu0 0
    %207 = vmatprep.subr.bf16.mxu0 0
    %208 = vmatpush2.bf16.xpose.msra.mxu0 0
    %209 = vmatprep.subr.bf16.mxu0 0
    %210 = vmatpush2.bf16.xpose.msra.mxu0 0
    %211 = vmatprep.subr.bf16.mxu0 0
    %212 = vmatpush2.bf16.xpose.msra.mxu0 0
    %213 = vmatprep.mubr.bf16.mxu0 0
    %214 = vmatmul.mubr.bf16.gmra.mxu0 %v173
    %v215 = vpop.f32.mrf.mxu0
    %v216 = vadd.f32 0.0, %v215
    %v217 = vpop.f32.mrf.mxu0
    %v218 = vpop.f32.mrf.mxu0
    %v219 = vadd.f32 0.0, %v218
    %v220 = vpop.f32.mrf.mxu0
    %221 = vdwg.mxu0
    %v223 = vsel %vm119, %v100, 0
    %v226 = vsel %vm119, %v117, 0
    %v229 = vsel %vm119, %v118, 0
    %231 = vmatprep.subr.bf16.mxu0 0
    %232 = vmatpush1.bf16.xpose.msra.mxu0 0
    %233 = vmatprep.subr.bf16.mxu0 0
    %234 = vmatpush1.bf16.xpose.msra.mxu0 0
    %235 = vmatprep.subr.bf16.mxu0 0
    %236 = vmatpush1.bf16.xpose.msra.mxu0 0
    %237 = vmatprep.subr.bf16.mxu0 0
    %238 = vmatpush1.bf16.xpose.msra.mxu0 0
    %239 = vmatprep.subr.bf16.mxu0 0
    %240 = vmatpush1.bf16.xpose.msra.mxu0 0
    %241 = vmatprep.subr.bf16.mxu0 0
    %242 = vmatpush1.bf16.xpose.msra.mxu0 0
    %243 = vmatprep.subr.bf16.mxu0 0
    %244 = vmatpush1.bf16.xpose.msra.mxu0 %v229
    %245 = vmatprep.subr.bf16.mxu0 0
    %246 = vmatpush1.bf16.xpose.msra.mxu0 %v226
    %247 = vmatprep.subr.bf16.mxu0 0
    %248 = vmatpush2.bf16.xpose.msra.mxu0 0
    %249 = vmatprep.subr.bf16.mxu0 0
    %250 = vmatpush2.bf16.xpose.msra.mxu0 0
    %251 = vmatprep.subr.bf16.mxu0 0
    %252 = vmatpush2.bf16.xpose.msra.mxu0 0
    %253 = vmatprep.subr.bf16.mxu0 0
    %254 = vmatpush2.bf16.xpose.msra.mxu0 0
    %255 = vmatprep.subr.bf16.mxu0 0
    %256 = vmatpush2.bf16.xpose.msra.mxu0 0
    %257 = vmatprep.subr.bf16.mxu0 0
    %258 = vmatpush2.bf16.xpose.msra.mxu0 0
    %259 = vmatprep.subr.bf16.mxu0 0
    %260 = vmatpush2.bf16.xpose.msra.mxu0 0
    %261 = vmatprep.subr.bf16.mxu0 0
    %262 = vmatpush2.bf16.xpose.msra.mxu0 0
    %263 = vmatprep.mubr.bf16.mxu0 0
    %264 = vmatmul.mubr.bf16.gmra.mxu0 %v223
    %v265 = vpop.f32.mrf.mxu0
    %v266 = vadd.f32 0.0, %v265
    %v267 = vpop.f32.mrf.mxu0
    %v268 = vpop.f32.mrf.mxu0
    %v269 = vpop.f32.mrf.mxu0
    %270 = vdwg.mxu0
    %v271 = vmul.f32 %v266, 0.17677669
    %v272 = vpack.c.bf16 %v171, %v170
    %v273 = vpack.c.bf16 %v219, %v216
    %v274 = vpack.c.bf16 %v271, %v271
    %v275 = vlaneseq
    %v276 = vshrl.u32 %v275, 7
    %v277 = vadd.s32 %v276, 8
    %v278 = vlaneseq
    %v279 = vand.u32 %v278, 127
    %v280 = vshra.s32 %v276, 3
    %v281 = vshra.s32 %v277, 3
    %v282 = vshra.s32 %v279, 3
    %vm283 = vcmp.eq.s32.totalorder %v280, %v282
    %vm284 = vcmp.eq.s32.totalorder %v281, %v282
    %vm285 = vcmp.eq.s32.totalorder %v280, %v279
    %vm286 = vcmp.eq.s32.totalorder %v281, %v279
    %v287 = vsel %vm285, 1, 0
    %v288 = vsel %vm286, 1, 0
    %v289 = vcvt.s32.f32 %v287
    %v290 = vcvt.s32.f32 %v288
    %v291 = vpack.c.bf16 %v290, %v289
    %vm292 = vcmp.eq.s32.totalorder %v282, %v276
    %v293 = vsel %vm292, 1, 0
    %v294 = vcvt.s32.f32 %v293
    %v295 = vpack.c.bf16 %v294, %v294
    %v296 = vshra.s32 %v279, 1
    %v297 = vand.u32 %v276, 7
    %v298 = vand.u32 %v277, 7
    %vm299 = vcmp.eq.s32.totalorder %v296, %v297
    %vm300 = vcmp.eq.s32.totalorder %v296, %v298
    %v301 = vsel %vm299, 1, 0
    %v302 = vsel %vm300, 1, 0
    %v303 = vcvt.s32.f32 %v301
    %v304 = vcvt.s32.f32 %v302
    %v305 = vpack.c.bf16 %v304, %v303
    %v306 = vand.u32 %v276, 1
    %v307 = vand.u32 %v277, 1
    %v308 = vand.u32 %v279, 1
    %vm309 = vcmp.eq.s32.totalorder %v306, %v308
    %vm310 = vcmp.eq.s32.totalorder %v307, %v308
    %v311 = vsel %vm309, 1, 0
    %v312 = vsel %vm310, 1, 0
    %v313 = vcvt.s32.f32 %v311
    %v314 = vcvt.s32.f32 %v312
    %v315 = vpack.c.bf16 %v314, %v313
    %vm316 = vcmask 130048
    %v318 = vsel %vm316, %v272, 0
    %v321 = vsel %vm316, %v273, 0
    %323 = vmatprep.subr.bf16.mxu0 0
    %324 = vmatpush1.bf16.xpose.msra.mxu0 0
    %325 = vmatprep.subr.bf16.mxu0 0
    %326 = vmatpush1.bf16.xpose.msra.mxu0 0
    %327 = vmatprep.subr.bf16.mxu0 0
    %328 = vmatpush1.bf16.xpose.msra.mxu0 0
    %329 = vmatprep.subr.bf16.mxu0 0
    %330 = vmatpush1.bf16.xpose.msra.mxu0 0
    %331 = vmatprep.subr.bf16.mxu0 0
    %332 = vmatpush1.bf16.xpose.msra.mxu0 0
    %333 = vmatprep.subr.bf16.mxu0 0
    %334 = vmatpush1.bf16.xpose.msra.mxu0 0
    %335 = vmatprep.subr.bf16.mxu0 0
    %336 = vmatpush1.bf16.xpose.msra.mxu0 0
    %337 = vmatprep.subr.bf16.mxu0 0
    %338 = vmatpush1.bf16.xpose.msra.mxu0 %v321
    %339 = vmatprep.subr.bf16.mxu0 0
    %340 = vmatpush2.bf16.xpose.msra.mxu0 0
    %341 = vmatprep.subr.bf16.mxu0 0
    %342 = vmatpush2.bf16.xpose.msra.mxu0 0
    %343 = vmatprep.subr.bf16.mxu0 0
    %344 = vmatpush2.bf16.xpose.msra.mxu0 0
    %345 = vmatprep.subr.bf16.mxu0 0
    %346 = vmatpush2.bf16.xpose.msra.mxu0 0
    %347 = vmatprep.subr.bf16.mxu0 0
    %348 = vmatpush2.bf16.xpose.msra.mxu0 0
    %349 = vmatprep.subr.bf16.mxu0 0
    %350 = vmatpush2.bf16.xpose.msra.mxu0 0
    %351 = vmatprep.subr.bf16.mxu0 0
    %352 = vmatpush2.bf16.xpose.msra.mxu0 0
    %353 = vmatprep.subr.bf16.mxu0 0
    %354 = vmatpush2.bf16.xpose.msra.mxu0 0
    %355 = vmatprep.mubr.bf16.mxu0 0
    %356 = vmatmul.mubr.bf16.gmra.mxu0 %v318
    %v357 = vpop.f32.mrf.mxu0
    %v358 = vadd.f32 0.0, %v357
    %v359 = vpop.f32.mrf.mxu0
    %v360 = vpop.f32.mrf.mxu0
    %v361 = vadd.f32 0.0, %v360
    %v362 = vpop.f32.mrf.mxu0
    %363 = vdwg.mxu0
    %v364 = vsel %vm283, %v358, -1e+30
    %v365 = vsel %vm284, %v361, -1e+30
    %v366 = vsel %vm316, %v364, -inf
    %367 = vmax.xlane.f32.xlu0 %v366
    %v368 = vpop.xlane.xlu0 %367
    %v369 = vsel %vm316, %v365, -inf
    %370 = vmax.xlane.f32.xlu0 %v369
    %v371 = vpop.xlane.xlu0 %370
    %v372 = vsub.f32 %v364, %v368
    %v373 = vsub.f32 %v365, %v371
    %v374 = vmul.f32 %v372, 1.442695
    %v375 = vpow.pop %v374
    %v376 = vmul.f32 %v373, 1.442695
    %v377 = vpow.pop %v376
    %v378 = vsel %vm316, %v375, 0.0
    %379 = vadd.xlane.f32.xlu0 %v378
    %v380 = vpop.xlane.xlu0 %379
    %v381 = vsel %vm316, %v377, 0.0
    %382 = vadd.xlane.f32.xlu0 %v381
    %v383 = vpop.xlane.xlu0 %382
    %v384 = vrcp.pop %v380
    %v385 = vrcp.pop %v383
    %v386 = vmul.f32 %v375, %v384
    %v387 = vmul.f32 %v377, %v385
    %v388 = vpack.c.bf16 %v387, %v386
    %v390 = vsel %vm316, %v388, 0
    %392 = vmatprep.subr.bf16.mxu0 0
    %393 = vmatpush1.bf16.msra.mxu0 0
    %394 = vmatprep.subr.bf16.mxu0 0
    %395 = vmatpush1.bf16.msra.mxu0 0
    %396 = vmatprep.subr.bf16.mxu0 0
    %397 = vmatpush1.bf16.msra.mxu0 0
    %398 = vmatprep.subr.bf16.mxu0 0
    %399 = vmatpush1.bf16.msra.mxu0 0
    %400 = vmatprep.subr.bf16.mxu0 0
    %401 = vmatpush1.bf16.msra.mxu0 0
    %402 = vmatprep.subr.bf16.mxu0 0
    %403 = vmatpush1.bf16.msra.mxu0 0
    %404 = vmatprep.subr.bf16.mxu0 0
    %405 = vmatpush1.bf16.msra.mxu0 0
    %406 = vmatprep.subr.bf16.mxu0 0
    %407 = vmatpush1.bf16.msra.mxu0 %v305
    %408 = vmatprep.subr.bf16.mxu0 0
    %409 = vmatpush2.bf16.msra.mxu0 0
    %410 = vmatprep.subr.bf16.mxu0 0
    %411 = vmatpush2.bf16.msra.mxu0 0
    %412 = vmatprep.subr.bf16.mxu0 0
    %413 = vmatpush2.bf16.msra.mxu0 0
    %414 = vmatprep.subr.bf16.mxu0 0
    %415 = vmatpush2.bf16.msra.mxu0 0
    %416 = vmatprep.subr.bf16.mxu0 0
    %417 = vmatpush2.bf16.msra.mxu0 0
    %418 = vmatprep.subr.bf16.mxu0 0
    %419 = vmatpush2.bf16.msra.mxu0 0
    %420 = vmatprep.subr.bf16.mxu0 0
    %421 = vmatpush2.bf16.msra.mxu0 0
    %422 = vmatprep.subr.bf16.mxu0 0
    %423 = vmatpush2.bf16.msra.mxu0 0
    %424 = vmatprep.mubr.bf16.mxu0 0
    %425 = vmatmul.mubr.bf16.gmra.mxu0 %v390
    %v426 = vpop.f32.mrf.mxu0
    %v427 = vadd.f32 0.0, %v426
    %v428 = vpop.f32.mrf.mxu0
    %v429 = vpop.f32.mrf.mxu0
    %v430 = vadd.f32 0.0, %v429
    %v431 = vpop.f32.mrf.mxu0
    %432 = vdwg.mxu0
    %vm433 = vcmask 15360
    %v435 = vsel %vm433, %v291, 0
    %vm437 = vcmask 1040384
    %v439 = vsel %vm437, %v274, 0
    %441 = vmatprep.subr.bf16.mxu0 0
    %442 = vmatpush1.bf16.msra.mxu0 0
    %443 = vmatprep.subr.bf16.mxu0 0
    %444 = vmatpush1.bf16.msra.mxu0 0
    %445 = vmatprep.subr.bf16.mxu0 0
    %446 = vmatpush1.bf16.msra.mxu0 0
    %447 = vmatprep.subr.bf16.mxu0 0
    %448 = vmatpush1.bf16.msra.mxu0 0
    %449 = vmatprep.subr.bf16.mxu0 0
    %450 = vmatpush1.bf16.msra.mxu0 0
    %451 = vmatprep.subr.bf16.mxu0 0
    %452 = vmatpush1.bf16.msra.mxu0 0
    %453 = vmatprep.subr.bf16.mxu0 0
    %454 = vmatpush1.bf16.msra.mxu0 0
    %455 = vmatprep.subr.bf16.mxu0 0
    %456 = vmatpush1.bf16.msra.mxu0 %v439
    %457 = vmatprep.subr.bf16.mxu0 0
    %458 = vmatpush2.bf16.msra.mxu0 0
    %459 = vmatprep.subr.bf16.mxu0 0
    %460 = vmatpush2.bf16.msra.mxu0 0
    %461 = vmatprep.subr.bf16.mxu0 0
    %462 = vmatpush2.bf16.msra.mxu0 0
    %463 = vmatprep.subr.bf16.mxu0 0
    %464 = vmatpush2.bf16.msra.mxu0 0
    %465 = vmatprep.subr.bf16.mxu0 0
    %466 = vmatpush2.bf16.msra.mxu0 0
    %467 = vmatprep.subr.bf16.mxu0 0
    %468 = vmatpush2.bf16.msra.mxu0 0
    %469 = vmatprep.subr.bf16.mxu0 0
    %470 = vmatpush2.bf16.msra.mxu0 0
    %471 = vmatprep.subr.bf16.mxu0 0
    %472 = vmatpush2.bf16.msra.mxu0 0
    %473 = vmatprep.mubr.bf16.mxu0 0
    %474 = vmatmul.mubr.bf16.gmra.mxu0 %v435
    %v475 = vpop.f32.mrf.mxu0
    %v476 = vadd.f32 0.0, %v475
    %v477 = vpop.f32.mrf.mxu0
    %v478 = vpop.f32.mrf.mxu0
    %v479 = vadd.f32 0.0, %v478
    %v480 = vpop.f32.mrf.mxu0
    %481 = vdwg.mxu0
    %v482 = vmul.f32 %v427, %v476
    %v483 = vmul.f32 %v430, %v479
    %v484 = vpack.c.bf16 %v483, %v482
    %v486 = vsel %vm316, %v484, 0
    %488 = vmatprep.subr.bf16.mxu0 0
    %489 = vmatpush1.bf16.msra.mxu0 0
    %490 = vmatprep.subr.bf16.mxu0 0
    %491 = vmatpush1.bf16.msra.mxu0 0
    %492 = vmatprep.subr.bf16.mxu0 0
    %493 = vmatpush1.bf16.msra.mxu0 0
    %494 = vmatprep.subr.bf16.mxu0 0
    %495 = vmatpush1.bf16.msra.mxu0 0
    %496 = vmatprep.subr.bf16.mxu0 0
    %497 = vmatpush1.bf16.msra.mxu0 0
    %498 = vmatprep.subr.bf16.mxu0 0
    %499 = vmatpush1.bf16.msra.mxu0 0
    %500 = vmatprep.subr.bf16.mxu0 0
    %501 = vmatpush1.bf16.msra.mxu0 0
    %502 = vmatprep.subr.bf16.mxu0 0
    %503 = vmatpush1.bf16.msra.mxu0 %v315
    %504 = vmatprep.subr.bf16.mxu0 0
    %505 = vmatpush2.bf16.msra.mxu0 0
    %506 = vmatprep.subr.bf16.mxu0 0
    %507 = vmatpush2.bf16.msra.mxu0 0
    %508 = vmatprep.subr.bf16.mxu0 0
    %509 = vmatpush2.bf16.msra.mxu0 0
    %510 = vmatprep.subr.bf16.mxu0 0
    %511 = vmatpush2.bf16.msra.mxu0 0
    %512 = vmatprep.subr.bf16.mxu0 0
    %513 = vmatpush2.bf16.msra.mxu0 0
    %514 = vmatprep.subr.bf16.mxu0 0
    %515 = vmatpush2.bf16.msra.mxu0 0
    %516 = vmatprep.subr.bf16.mxu0 0
    %517 = vmatpush2.bf16.msra.mxu0 0
    %518 = vmatprep.subr.bf16.mxu0 0
    %519 = vmatpush2.bf16.msra.mxu0 0
    %520 = vmatprep.mubr.bf16.mxu0 0
    %521 = vmatmul.mubr.bf16.gmra.mxu0 %v486
    %v522 = vpop.f32.mrf.mxu0
    %v523 = vadd.f32 0.0, %v522
    %v524 = vpop.f32.mrf.mxu0
    %v525 = vpop.f32.mrf.mxu0
    %v526 = vadd.f32 0.0, %v525
    %v527 = vpop.f32.mrf.mxu0
    %528 = vdwg.mxu0
    %v529 = vmul.f32 %v523, %v303
    %v530 = vmul.f32 %v526, %v304
    %v531 = vpack.c.bf16 %v530, %v529
    %v533 = vsel %vm316, %v295, 0
    %535 = vmatprep.subr.bf16.mxu0 0
    %536 = vmatpush1.bf16.msra.mxu0 0
    %537 = vmatprep.subr.bf16.mxu0 0
    %538 = vmatpush1.bf16.msra.mxu0 0
    %539 = vmatprep.subr.bf16.mxu0 0
    %540 = vmatpush1.bf16.msra.mxu0 0
    %541 = vmatprep.subr.bf16.mxu0 0
    %542 = vmatpush1.bf16.msra.mxu0 0
    %543 = vmatprep.subr.bf16.mxu0 0
    %544 = vmatpush1.bf16.msra.mxu0 0
    %545 = vmatprep.subr.bf16.mxu0 0
    %546 = vmatpush1.bf16.msra.mxu0 0
    %547 = vmatprep.subr.bf16.mxu0 0
    %548 = vmatpush1.bf16.msra.mxu0 0
    %549 = vmatprep.subr.bf16.mxu0 0
    %550 = vmatpush1.bf16.msra.mxu0 %v531
    %551 = vmatprep.subr.bf16.mxu0 0
    %552 = vmatpush2.bf16.msra.mxu0 0
    %553 = vmatprep.subr.bf16.mxu0 0
    %554 = vmatpush2.bf16.msra.mxu0 0
    %555 = vmatprep.subr.bf16.mxu0 0
    %556 = vmatpush2.bf16.msra.mxu0 0
    %557 = vmatprep.subr.bf16.mxu0 0
    %558 = vmatpush2.bf16.msra.mxu0 0
    %559 = vmatprep.subr.bf16.mxu0 0
    %560 = vmatpush2.bf16.msra.mxu0 0
    %561 = vmatprep.subr.bf16.mxu0 0
    %562 = vmatpush2.bf16.msra.mxu0 0
    %563 = vmatprep.subr.bf16.mxu0 0
    %564 = vmatpush2.bf16.msra.mxu0 0
    %565 = vmatprep.subr.bf16.mxu0 0
    %566 = vmatpush2.bf16.msra.mxu0 0
    %567 = vmatprep.mubr.bf16.mxu0 0
    %568 = vmatmul.mubr.bf16.gmra.mxu0 %v533
    %v569 = vpop.f32.mrf.mxu0
    %v570 = vadd.f32 0.0, %v569
    %v571 = vpop.f32.mrf.mxu0
    %v572 = vpop.f32.mrf.mxu0
    %v573 = vpop.f32.mrf.mxu0
    %574 = vdwg.mxu0
    %v575 = vpack.c.bf16 %v570, %v570
    %577 = vrot.lane.b32.xlu0 %v272, 112
    %v578 = vpop.permute.xlu0 %577
    %580 = vrot.lane.b32.xlu0 %v273, 112
    %v581 = vpop.permute.xlu0 %580
    %v583 = vsel %vm316, %v578, 0
    %v586 = vsel %vm316, %v581, 0
    %588 = vmatprep.subr.bf16.mxu0 0
    %589 = vmatpush1.bf16.xpose.msra.mxu0 0
    %590 = vmatprep.subr.bf16.mxu0 0
    %591 = vmatpush1.bf16.xpose.msra.mxu0 0
    %592 = vmatprep.subr.bf16.mxu0 0
    %593 = vmatpush1.bf16.xpose.msra.mxu0 0
    %594 = vmatprep.subr.bf16.mxu0 0
    %595 = vmatpush1.bf16.xpose.msra.mxu0 0
    %596 = vmatprep.subr.bf16.mxu0 0
    %597 = vmatpush1.bf16.xpose.msra.mxu0 0
    %598 = vmatprep.subr.bf16.mxu0 0
    %599 = vmatpush1.bf16.xpose.msra.mxu0 0
    %600 = vmatprep.subr.bf16.mxu0 0
    %601 = vmatpush1.bf16.xpose.msra.mxu0 0
    %602 = vmatprep.subr.bf16.mxu0 0
    %603 = vmatpush1.bf16.xpose.msra.mxu0 %v586
    %604 = vmatprep.subr.bf16.mxu0 0
    %605 = vmatpush2.bf16.xpose.msra.mxu0 0
    %606 = vmatprep.subr.bf16.mxu0 0
    %607 = vmatpush2.bf16.xpose.msra.mxu0 0
    %608 = vmatprep.subr.bf16.mxu0 0
    %609 = vmatpush2.bf16.xpose.msra.mxu0 0
    %610 = vmatprep.subr.bf16.mxu0 0
    %611 = vmatpush2.bf16.xpose.msra.mxu0 0
    %612 = vmatprep.subr.bf16.mxu0 0
    %613 = vmatpush2.bf16.xpose.msra.mxu0 0
    %614 = vmatprep.subr.bf16.mxu0 0
    %615 = vmatpush2.bf16.xpose.msra.mxu0 0
    %616 = vmatprep.subr.bf16.mxu0 0
    %617 = vmatpush2.bf16.xpose.msra.mxu0 0
    %618 = vmatprep.subr.bf16.mxu0 0
    %619 = vmatpush2.bf16.xpose.msra.mxu0 0
    %620 = vmatprep.mubr.bf16.mxu0 0
    %621 = vmatmul.mubr.bf16.gmra.mxu0 %v583
    %v622 = vpop.f32.mrf.mxu0
    %v623 = vadd.f32 0.0, %v622
    %v624 = vpop.f32.mrf.mxu0
    %v625 = vpop.f32.mrf.mxu0
    %v626 = vadd.f32 0.0, %v625
    %v627 = vpop.f32.mrf.mxu0
    %628 = vdwg.mxu0
    %v629 = vsel %vm283, %v623, -1e+30
    %v630 = vsel %vm284, %v626, -1e+30
    %v631 = vsel %vm316, %v629, -inf
    %632 = vmax.xlane.f32.xlu0 %v631
    %v633 = vpop.xlane.xlu0 %632
    %v634 = vsel %vm316, %v630, -inf
    %635 = vmax.xlane.f32.xlu0 %v634
    %v636 = vpop.xlane.xlu0 %635
    %v637 = vsub.f32 %v629, %v633
    %v638 = vsub.f32 %v630, %v636
    %v639 = vmul.f32 %v637, 1.442695
    %v640 = vpow.pop %v639
    %v641 = vmul.f32 %v638, 1.442695
    %v642 = vpow.pop %v641
    %v643 = vsel %vm316, %v640, 0.0
    %644 = vadd.xlane.f32.xlu0 %v643
    %v645 = vpop.xlane.xlu0 %644
    %v646 = vsel %vm316, %v642, 0.0
    %647 = vadd.xlane.f32.xlu0 %v646
    %v648 = vpop.xlane.xlu0 %647
    %v649 = vrcp.pop %v645
    %v650 = vrcp.pop %v648
    %v651 = vmul.f32 %v640, %v649
    %v652 = vmul.f32 %v642, %v650
    %v653 = vpack.c.bf16 %v652, %v651
    %v655 = vsel %vm316, %v653, 0
    %657 = vmatprep.subr.bf16.mxu0 0
    %658 = vmatpush1.bf16.msra.mxu0 0
    %659 = vmatprep.subr.bf16.mxu0 0
    %660 = vmatpush1.bf16.msra.mxu0 0
    %661 = vmatprep.subr.bf16.mxu0 0
    %662 = vmatpush1.bf16.msra.mxu0 0
    %663 = vmatprep.subr.bf16.mxu0 0
    %664 = vmatpush1.bf16.msra.mxu0 0
    %665 = vmatprep.subr.bf16.mxu0 0
    %666 = vmatpush1.bf16.msra.mxu0 0
    %667 = vmatprep.subr.bf16.mxu0 0
    %668 = vmatpush1.bf16.msra.mxu0 0
    %669 = vmatprep.subr.bf16.mxu0 0
    %670 = vmatpush1.bf16.msra.mxu0 0
    %671 = vmatprep.subr.bf16.mxu0 0
    %672 = vmatpush1.bf16.msra.mxu0 %v305
    %673 = vmatprep.subr.bf16.mxu0 0
    %674 = vmatpush2.bf16.msra.mxu0 0
    %675 = vmatprep.subr.bf16.mxu0 0
    %676 = vmatpush2.bf16.msra.mxu0 0
    %677 = vmatprep.subr.bf16.mxu0 0
    %678 = vmatpush2.bf16.msra.mxu0 0
    %679 = vmatprep.subr.bf16.mxu0 0
    %680 = vmatpush2.bf16.msra.mxu0 0
    %681 = vmatprep.subr.bf16.mxu0 0
    %682 = vmatpush2.bf16.msra.mxu0 0
    %683 = vmatprep.subr.bf16.mxu0 0
    %684 = vmatpush2.bf16.msra.mxu0 0
    %685 = vmatprep.subr.bf16.mxu0 0
    %686 = vmatpush2.bf16.msra.mxu0 0
    %687 = vmatprep.subr.bf16.mxu0 0
    %688 = vmatpush2.bf16.msra.mxu0 0
    %689 = vmatprep.mubr.bf16.mxu0 0
    %690 = vmatmul.mubr.bf16.gmra.mxu0 %v655
    %v691 = vpop.f32.mrf.mxu0
    %v692 = vadd.f32 0.0, %v691
    %v693 = vpop.f32.mrf.mxu0
    %v694 = vpop.f32.mrf.mxu0
    %v695 = vadd.f32 0.0, %v694
    %v696 = vpop.f32.mrf.mxu0
    %697 = vdwg.mxu0
    %699 = vrot.lane.b32.xlu0 %v274, 112
    %v700 = vpop.permute.xlu0 %699
    %v702 = vsel %vm437, %v700, 0
    %704 = vmatprep.subr.bf16.mxu0 0
    %705 = vmatpush1.bf16.msra.mxu0 0
    %706 = vmatprep.subr.bf16.mxu0 0
    %707 = vmatpush1.bf16.msra.mxu0 0
    %708 = vmatprep.subr.bf16.mxu0 0
    %709 = vmatpush1.bf16.msra.mxu0 0
    %710 = vmatprep.subr.bf16.mxu0 0
    %711 = vmatpush1.bf16.msra.mxu0 0
    %712 = vmatprep.subr.bf16.mxu0 0
    %713 = vmatpush1.bf16.msra.mxu0 0
    %714 = vmatprep.subr.bf16.mxu0 0
    %715 = vmatpush1.bf16.msra.mxu0 0
    %716 = vmatprep.subr.bf16.mxu0 0
    %717 = vmatpush1.bf16.msra.mxu0 0
    %718 = vmatprep.subr.bf16.mxu0 0
    %719 = vmatpush1.bf16.msra.mxu0 %v702
    %720 = vmatprep.subr.bf16.mxu0 0
    %721 = vmatpush2.bf16.msra.mxu0 0
    %722 = vmatprep.subr.bf16.mxu0 0
    %723 = vmatpush2.bf16.msra.mxu0 0
    %724 = vmatprep.subr.bf16.mxu0 0
    %725 = vmatpush2.bf16.msra.mxu0 0
    %726 = vmatprep.subr.bf16.mxu0 0
    %727 = vmatpush2.bf16.msra.mxu0 0
    %728 = vmatprep.subr.bf16.mxu0 0
    %729 = vmatpush2.bf16.msra.mxu0 0
    %730 = vmatprep.subr.bf16.mxu0 0
    %731 = vmatpush2.bf16.msra.mxu0 0
    %732 = vmatprep.subr.bf16.mxu0 0
    %733 = vmatpush2.bf16.msra.mxu0 0
    %734 = vmatprep.subr.bf16.mxu0 0
    %735 = vmatpush2.bf16.msra.mxu0 0
    %736 = vmatprep.mubr.bf16.mxu0 0
    %737 = vmatmul.mubr.bf16.gmra.mxu0 %v435
    %v738 = vpop.f32.mrf.mxu0
    %v739 = vadd.f32 0.0, %v738
    %v740 = vpop.f32.mrf.mxu0
    %v741 = vpop.f32.mrf.mxu0
    %v742 = vadd.f32 0.0, %v741
    %v743 = vpop.f32.mrf.mxu0
    %744 = vdwg.mxu0
    %v745 = vmul.f32 %v692, %v739
    %v746 = vmul.f32 %v695, %v742
    %v747 = vpack.c.bf16 %v746, %v745
    %v749 = vsel %vm316, %v747, 0
    %751 = vmatprep.subr.bf16.mxu0 0
    %752 = vmatpush1.bf16.msra.mxu0 0
    %753 = vmatprep.subr.bf16.mxu0 0
    %754 = vmatpush1.bf16.msra.mxu0 0
    %755 = vmatprep.subr.bf16.mxu0 0
    %756 = vmatpush1.bf16.msra.mxu0 0
    %757 = vmatprep.subr.bf16.mxu0 0
    %758 = vmatpush1.bf16.msra.mxu0 0
    %759 = vmatprep.subr.bf16.mxu0 0
    %760 = vmatpush1.bf16.msra.mxu0 0
    %761 = vmatprep.subr.bf16.mxu0 0
    %762 = vmatpush1.bf16.msra.mxu0 0
    %763 = vmatprep.subr.bf16.mxu0 0
    %764 = vmatpush1.bf16.msra.mxu0 0
    %765 = vmatprep.subr.bf16.mxu0 0
    %766 = vmatpush1.bf16.msra.mxu0 %v315
    %767 = vmatprep.subr.bf16.mxu0 0
    %768 = vmatpush2.bf16.msra.mxu0 0
    %769 = vmatprep.subr.bf16.mxu0 0
    %770 = vmatpush2.bf16.msra.mxu0 0
    %771 = vmatprep.subr.bf16.mxu0 0
    %772 = vmatpush2.bf16.msra.mxu0 0
    %773 = vmatprep.subr.bf16.mxu0 0
    %774 = vmatpush2.bf16.msra.mxu0 0
    %775 = vmatprep.subr.bf16.mxu0 0
    %776 = vmatpush2.bf16.msra.mxu0 0
    %777 = vmatprep.subr.bf16.mxu0 0
    %778 = vmatpush2.bf16.msra.mxu0 0
    %779 = vmatprep.subr.bf16.mxu0 0
    %780 = vmatpush2.bf16.msra.mxu0 0
    %781 = vmatprep.subr.bf16.mxu0 0
    %782 = vmatpush2.bf16.msra.mxu0 0
    %783 = vmatprep.mubr.bf16.mxu0 0
    %784 = vmatmul.mubr.bf16.gmra.mxu0 %v749
    %v785 = vpop.f32.mrf.mxu0
    %v786 = vadd.f32 0.0, %v785
    %v787 = vpop.f32.mrf.mxu0
    %v788 = vpop.f32.mrf.mxu0
    %v789 = vadd.f32 0.0, %v788
    %v790 = vpop.f32.mrf.mxu0
    %791 = vdwg.mxu0
    %v792 = vmul.f32 %v786, %v303
    %v793 = vmul.f32 %v789, %v304
    %v794 = vpack.c.bf16 %v793, %v792
    %795 = vmatprep.subr.bf16.mxu0 0
    %796 = vmatpush1.bf16.msra.mxu0 0
    %797 = vmatprep.subr.bf16.mxu0 0
    %798 = vmatpush1.bf16.msra.mxu0 0
    %799 = vmatprep.subr.bf16.mxu0 0
    %800 = vmatpush1.bf16.msra.mxu0 0
    %801 = vmatprep.subr.bf16.mxu0 0
    %802 = vmatpush1.bf16.msra.mxu0 0
    %803 = vmatprep.subr.bf16.mxu0 0
    %804 = vmatpush1.bf16.msra.mxu0 0
    %805 = vmatprep.subr.bf16.mxu0 0
    %806 = vmatpush1.bf16.msra.mxu0 0
    %807 = vmatprep.subr.bf16.mxu0 0
    %808 = vmatpush1.bf16.msra.mxu0 0
    %809 = vmatprep.subr.bf16.mxu0 0
    %810 = vmatpush1.bf16.msra.mxu0 %v794
    %811 = vmatprep.subr.bf16.mxu0 0
    %812 = vmatpush2.bf16.msra.mxu0 0
    %813 = vmatprep.subr.bf16.mxu0 0
    %814 = vmatpush2.bf16.msra.mxu0 0
    %815 = vmatprep.subr.bf16.mxu0 0
    %816 = vmatpush2.bf16.msra.mxu0 0
    %817 = vmatprep.subr.bf16.mxu0 0
    %818 = vmatpush2.bf16.msra.mxu0 0
    %819 = vmatprep.subr.bf16.mxu0 0
    %820 = vmatpush2.bf16.msra.mxu0 0
    %821 = vmatprep.subr.bf16.mxu0 0
    %822 = vmatpush2.bf16.msra.mxu0 0
    %823 = vmatprep.subr.bf16.mxu0 0
    %824 = vmatpush2.bf16.msra.mxu0 0
    %825 = vmatprep.subr.bf16.mxu0 0
    %826 = vmatpush2.bf16.msra.mxu0 0
    %827 = vmatprep.mubr.bf16.mxu0 0
    %828 = vmatmul.mubr.bf16.gmra.mxu0 %v533
    %v829 = vpop.f32.mrf.mxu0
    %v830 = vadd.f32 0.0, %v829
    %v831 = vpop.f32.mrf.mxu0
    %v832 = vpop.f32.mrf.mxu0
    %v833 = vpop.f32.mrf.mxu0
    %834 = vdwg.mxu0
    %v835 = vpack.c.bf16 %v830, %v830
    %837 = vrot.lane.b32.xlu0 %v95, 112
    %v838 = vpop.permute.xlu0 %837
    %v840 = vsel %vm316, %v838, 0
    %v843 = vsel %vm316, %v835, 0
    %845 = vmatprep.subr.bf16.mxu0 0
    %846 = vmatpush1.bf16.xpose.msra.mxu0 0
    %847 = vmatprep.subr.bf16.mxu0 0
    %848 = vmatpush1.bf16.xpose.msra.mxu0 0
    %849 = vmatprep.subr.bf16.mxu0 0
    %850 = vmatpush1.bf16.xpose.msra.mxu0 0
    %851 = vmatprep.subr.bf16.mxu0 0
    %852 = vmatpush1.bf16.xpose.msra.mxu0 0
    %853 = vmatprep.subr.bf16.mxu0 0
    %854 = vmatpush1.bf16.xpose.msra.mxu0 0
    %855 = vmatprep.subr.bf16.mxu0 0
    %856 = vmatpush1.bf16.xpose.msra.mxu0 0
    %857 = vmatprep.subr.bf16.mxu0 0
    %858 = vmatpush1.bf16.xpose.msra.mxu0 0
    %859 = vmatprep.subr.bf16.mxu0 0
    %860 = vmatpush1.bf16.xpose.msra.mxu0 %v843
    %861 = vmatprep.subr.bf16.mxu0 0
    %862 = vmatpush2.bf16.xpose.msra.mxu0 0
    %863 = vmatprep.subr.bf16.mxu0 0
    %864 = vmatpush2.bf16.xpose.msra.mxu0 0
    %865 = vmatprep.subr.bf16.mxu0 0
    %866 = vmatpush2.bf16.xpose.msra.mxu0 0
    %867 = vmatprep.subr.bf16.mxu0 0
    %868 = vmatpush2.bf16.xpose.msra.mxu0 0
    %869 = vmatprep.subr.bf16.mxu0 0
    %870 = vmatpush2.bf16.xpose.msra.mxu0 0
    %871 = vmatprep.subr.bf16.mxu0 0
    %872 = vmatpush2.bf16.xpose.msra.mxu0 0
    %873 = vmatprep.subr.bf16.mxu0 0
    %874 = vmatpush2.bf16.xpose.msra.mxu0 0
    %875 = vmatprep.subr.bf16.mxu0 0
    %876 = vmatpush2.bf16.xpose.msra.mxu0 0
    %877 = vmatprep.mubr.bf16.mxu0 0
    %878 = vmatmul.mubr.bf16.gmra.mxu0 %v840
    %v879 = vpop.f32.mrf.mxu0
    %v880 = vadd.f32 0.0, %v879
    %v881 = vpop.f32.mrf.mxu0
    %v882 = vpop.f32.mrf.mxu0
    %v883 = vadd.f32 0.0, %v882
    %v884 = vpop.f32.mrf.mxu0
    %885 = vdwg.mxu0
    %v886 = vsel %vm316, %v95, 0
    %v889 = vsel %vm316, %v575, 0
    %891 = vmatprep.subr.bf16.mxu0 0
    %892 = vmatpush1.bf16.xpose.msra.mxu0 0
    %893 = vmatprep.subr.bf16.mxu0 0
    %894 = vmatpush1.bf16.xpose.msra.mxu0 0
    %895 = vmatprep.subr.bf16.mxu0 0
    %896 = vmatpush1.bf16.xpose.msra.mxu0 0
    %897 = vmatprep.subr.bf16.mxu0 0
    %898 = vmatpush1.bf16.xpose.msra.mxu0 0
    %899 = vmatprep.subr.bf16.mxu0 0
    %900 = vmatpush1.bf16.xpose.msra.mxu0 0
    %901 = vmatprep.subr.bf16.mxu0 0
    %902 = vmatpush1.bf16.xpose.msra.mxu0 0
    %903 = vmatprep.subr.bf16.mxu0 0
    %904 = vmatpush1.bf16.xpose.msra.mxu0 0
    %905 = vmatprep.subr.bf16.mxu0 0
    %906 = vmatpush1.bf16.xpose.msra.mxu0 %v889
    %907 = vmatprep.subr.bf16.mxu0 0
    %908 = vmatpush2.bf16.xpose.msra.mxu0 0
    %909 = vmatprep.subr.bf16.mxu0 0
    %910 = vmatpush2.bf16.xpose.msra.mxu0 0
    %911 = vmatprep.subr.bf16.mxu0 0
    %912 = vmatpush2.bf16.xpose.msra.mxu0 0
    %913 = vmatprep.subr.bf16.mxu0 0
    %914 = vmatpush2.bf16.xpose.msra.mxu0 0
    %915 = vmatprep.subr.bf16.mxu0 0
    %916 = vmatpush2.bf16.xpose.msra.mxu0 0
    %917 = vmatprep.subr.bf16.mxu0 0
    %918 = vmatpush2.bf16.xpose.msra.mxu0 0
    %919 = vmatprep.subr.bf16.mxu0 0
    %920 = vmatpush2.bf16.xpose.msra.mxu0 0
    %921 = vmatprep.subr.bf16.mxu0 0
    %922 = vmatpush2.bf16.xpose.msra.mxu0 0
    %923 = vmatprep.mubr.bf16.mxu0 0
    %924 = vmatmul.mubr.bf16.gmra.mxu0 %v886
    %v925 = vpop.f32.mrf.mxu0
    %v926 = vadd.f32 %v880, %v925
    %v927 = vpop.f32.mrf.mxu0
    %v928 = vpop.f32.mrf.mxu0
    %v929 = vadd.f32 %v883, %v928
    %v930 = vpop.f32.mrf.mxu0
    %931 = vdwg.mxu0
    %v932 = vand.u32 2147483647, %v926
    %v933 = vand.u32 2147483647, %v929
    %v934 = vsub.f32 0.0, %v932
    %v935 = vsub.f32 0.0, %v933
    %v936 = vmul.f32 %v934, 1.442695
    %v937 = vpow.pop %v936
    %v938 = vmul.f32 %v935, 1.442695
    %v939 = vpow.pop %v938
    %v940 = vadd.f32 %v937, 1.0
    %v941 = vadd.f32 %v939, 1.0
    %v942 = vrcp.pop %v940
    %v943 = vmul.f32 1.0, %v942
    %v944 = vrcp.pop %v941
    %v945 = vmul.f32 1.0, %v944
    %vm946 = vcmp.ge.f32.partialorder %v926, 0.0
    %vm947 = vcmp.ge.f32.partialorder %v929, 0.0
    %v948 = vmul.f32 %v937, %v943
    %v949 = vmul.f32 %v939, %v945
    %v950 = vsel %vm946, %v943, %v948
    %v951 = vsel %vm947, %v945, %v949
    %v952 = vpack.c.bf16 %v951, %v950
    %v954 = vsel %vm433, %v952, 0
    %v956 = vsel %vm437, %v100, 0
    %958 = vmatprep.subr.bf16.mxu0 0
    %959 = vmatpush1.bf16.msra.mxu0 0
    %960 = vmatprep.subr.bf16.mxu0 0
    %961 = vmatpush1.bf16.msra.mxu0 0
    %962 = vmatprep.subr.bf16.mxu0 0
    %963 = vmatpush1.bf16.msra.mxu0 0
    %964 = vmatprep.subr.bf16.mxu0 0
    %965 = vmatpush1.bf16.msra.mxu0 0
    %966 = vmatprep.subr.bf16.mxu0 0
    %967 = vmatpush1.bf16.msra.mxu0 0
    %968 = vmatprep.subr.bf16.mxu0 0
    %969 = vmatpush1.bf16.msra.mxu0 0
    %970 = vmatprep.subr.bf16.mxu0 0
    %971 = vmatpush1.bf16.msra.mxu0 0
    %972 = vmatprep.subr.bf16.mxu0 0
    %973 = vmatpush1.bf16.msra.mxu0 %v956
    %974 = vmatprep.subr.bf16.mxu0 0
    %975 = vmatpush2.bf16.msra.mxu0 0
    %976 = vmatprep.subr.bf16.mxu0 0
    %977 = vmatpush2.bf16.msra.mxu0 0
    %978 = vmatprep.subr.bf16.mxu0 0
    %979 = vmatpush2.bf16.msra.mxu0 0
    %980 = vmatprep.subr.bf16.mxu0 0
    %981 = vmatpush2.bf16.msra.mxu0 0
    %982 = vmatprep.subr.bf16.mxu0 0
    %983 = vmatpush2.bf16.msra.mxu0 0
    %984 = vmatprep.subr.bf16.mxu0 0
    %985 = vmatpush2.bf16.msra.mxu0 0
    %986 = vmatprep.subr.bf16.mxu0 0
    %987 = vmatpush2.bf16.msra.mxu0 0
    %988 = vmatprep.subr.bf16.mxu0 0
    %989 = vmatpush2.bf16.msra.mxu0 0
    %990 = vmatprep.mubr.bf16.mxu0 0
    %991 = vmatmul.mubr.bf16.gmra.mxu0 %v954
    %v992 = vpop.f32.mrf.mxu0
    %v993 = vadd.f32 0.0, %v992
    %v994 = vpop.f32.mrf.mxu0
    %v995 = vpop.f32.mrf.mxu0
    %v996 = vadd.f32 0.0, %v995
    %v997 = vpop.f32.mrf.mxu0
    %998 = vdwg.mxu0
    %999 = vst.msk [vmem:[#allocation11] sm:$0xff] %vm119, %v993
    %1000 = vst.msk [vmem:[#allocation11 + $0x8] sm:$0xff] %vm119, %v996
    // Predicated region
    $region46: #{tpu_custom_call.1} parent=1 // pred_check
      _
    $region47: #{tpu_custom_call.1} parent=1 // pred_check_branch
      %1002 = sbr.rel (0) target = $region49
    $region48: #{tpu_custom_call.1} parent=1 // pred_region
      %s1004 = ssub.s32 256, 256
      %1005 = vsyncadd [#allocation4], %s1004
      %s1006 = sshll.u32 [#allocation11], 4
      %s1007 = int_to_ptr.vmem [resolvable:$true] %s1006
      %1012 = dma.vmem_to_hbm [thread:$0]  %s1007, 256, %s6, [#allocation4], 128, 128, 8
    $region49: #{tpu_custom_call.1} parent=1 // pred_fallthru
      _
    // Predicated region
    $region50: #{tpu_custom_call.1} parent=1 // pred_check
      _
    $region51: #{tpu_custom_call.1} parent=1 // pred_check_branch
      %1014 = sbr.rel (0) target = $region53
    $region52: #{tpu_custom_call.1} parent=1 // pred_region
      %1015 = dma.done [#allocation4], 256
    $region53: #{tpu_custom_call.1} parent=1 // pred_fallthru
      _
    %1016 = vsyncpa [#allocation3], 1
    %1017 = vsyncpa [#allocation6], 1
    %1018 = vsyncpa [#allocation9], 1
    %1019 = vsyncpa [#allocation4], 1

</llo_original>
